<compile_context>
chip_gen: v7x
topology: tpu7x:2x2x1
jax: 0.10.0
libtpu: 0.0.40
codegen_flags: <defaults>
</compile_context>

<pallas_src>
import math

import jax
import jax.numpy as jnp
from jax.experimental import pallas as pl
from jax.experimental.pallas import tpu as pltpu


def _neg_dist_kernel(x_ref, ct_ref, csq_ref, out_ref):
    # x_ref:   (TB, D)   feature tile
    # ct_ref:  (D, TC)   pre-transposed centers tile
    # csq_ref: (1, TC)   precomputed ||centers||^2 tile
    # out_ref: (TB, TC)  -dist tile
    x = x_ref[...]

    # [TB,D] x [D,TC] on the MXU, f32 accumulation (no in-kernel transpose).
    xc = jnp.dot(x, ct_ref[...], preferred_element_type=jnp.float32)

    # ||x||^2 per row, f32.
    x_sq = jnp.sum(jnp.square(x.astype(jnp.float32)), axis=1, keepdims=True)

    # -dist = 2*x@c^T - ||x||^2 - ||c||^2  (negation folded in).
    out_ref[...] = (2.0 * xc - x_sq - csq_ref[...]).astype(out_ref.dtype)


def _round_up(v, m):
    return ((v + m - 1) // m) * m


def _sublane_pack(dtype):
    # Rows per packed sublane group: 8 for 4-byte, 16 for 2-byte, 32 for 1-byte.
    return max(8, 32 // max(jnp.dtype(dtype).itemsize, 1))


def _vmem_capacity_bytes():
    try:
        return int(pltpu.get_tpu_info().vmem_capacity_bytes)
    except Exception:
        return 64 * 1024 * 1024  # conservative fallback: v7x per-TensorCore VMEM


def dce_loss_mean_forward(x, centers, *, block_b=1024):
    """JAX/Pallas equivalent of dce_loss_mean.forward.

    x:       (B, feat_dim)
    centers: (n_classes, feat_dim)
    returns: (centers, -dist) with -dist of shape (B, n_classes).
    """
    B, D = x.shape
    C, D2 = centers.shape
    assert D == D2, "feat_dim mismatch"

    out_dtype = jnp.result_type(x.dtype, centers.dtype)

    # One-time wrapper work, amortized over all batch tiles.
    centers_t = centers.T                                                   # (D, C)
    centers_sq = jnp.sum(
        jnp.square(centers.astype(jnp.float32)), axis=1
    ).reshape(1, C)                                                         # (1, C)

    x_item = jnp.dtype(x.dtype).itemsize
    c_item = jnp.dtype(centers.dtype).itemsize
    o_item = jnp.dtype(out_dtype).itemsize
    pack = max(_sublane_pack(x.dtype), _sublane_pack(out_dtype))

    # Per-generation VMEM budget, raised explicitly via vmem_limit_bytes with
    # headroom for Mosaic scratch.
    vmem_cap = _vmem_capacity_bytes()
    vmem_limit = min(int(vmem_cap * 0.75), 96 * 1024 * 1024)
    data_budget = int(vmem_limit * 0.85)

    # All operands counted double-buffered (conservative for the resident
    # centers block; pl.Buffered(1) could halve that but is not needed to fit).
    def _resident_bytes(tc):
        return 2 * (D * tc * c_item + tc * 4)      # centers^T tile + ||c||^2 tile

    def _per_row_bytes(tc):
        return 2 * (D * x_item + tc * o_item)      # x row + out row

    # Class tiling: keep all classes resident when they leave room for a decent
    # batch tile; otherwise fall back to 128-aligned class tiles (bounds VMEM on
    # v7x for large n_classes * feat_dim; re-reading the small operand is cheap
    # on a mem-bound kernel).
    min_rows = 128
    if _resident_bytes(C) + min_rows * _per_row_bytes(C) <= data_budget:
        TC = C
    else:
        TC = 2048
        while TC > 128 and (
            _resident_bytes(TC) + min_rows * _per_row_bytes(TC) > data_budget
        ):
            TC //= 2
    nc = pl.cdiv(C, TC)

    # Batch tile: as large as the budget allows, rounded to sublane packing,
    # capped so the parallel batch axis has >= 2 steps (megacore on v7x).
    max_tb = (data_budget - _resident_bytes(TC)) // max(_per_row_bytes(TC), 1)
    TB = min(block_b, _round_up(B, pack), max(int(max_tb) // pack, 1) * pack)
    if B > pack:
        TB = min(TB, _round_up(pl.cdiv(B, 2), pack))
    TB = max(TB, pack)
    nb = pl.cdiv(B, TB)

    cost = pl.CostEstimate(
        flops=2 * B * C * D + 3 * B * C,
        transcendentals=0,
        bytes_accessed=B * D * x_item + nb * C * D * c_item + B * C * o_item,
    )

    neg_dist = pl.pallas_call(
        _neg_dist_kernel,
        out_shape=jax.ShapeDtypeStruct((B, C), out_dtype),
        grid_spec=pl.GridSpec(
            grid=(nb, nc),
            in_specs=[
                pl.BlockSpec((TB, D), lambda i, j: (i, 0)),   # x: streamed over B
                pl.BlockSpec((D, TC), lambda i, j: (0, j)),   # centers^T (resident if nc==1)
                pl.BlockSpec((1, TC), lambda i, j: (0, j)),   # ||centers||^2
            ],
            out_specs=pl.BlockSpec((TB, TC), lambda i, j: (i, j)),
        ),
        compiler_params=pltpu.CompilerParams(
            dimension_semantics=("parallel", "parallel"),
            vmem_limit_bytes=vmem_limit,
        ),
        cost_estimate=cost,
    )(x, centers_t, centers_sq)

    return centers, neg_dist


def _reference(x, centers):
    # Pure-JAX reference mirroring the PyTorch code line-by-line.
    features_square = jnp.sum(x ** 2, axis=1, keepdims=True)          # (B, 1)
    centers_square = jnp.sum(centers.T ** 2, axis=0, keepdims=True)   # (1, C)
    features_into_centers = 2.0 * (x @ centers.T)                     # (B, C)
    dist = features_square + centers_square - features_into_centers
    return centers, -dist


if __name__ == "__main__":
    key = jax.random.PRNGKey(0)
    kx, kc = jax.random.split(key)

    n_classes = 16
    feat_dim = 32
    batch = 8

    # Deterministic parameter init mimicking nn.init.kaiming_normal_
    # (fan_in = feat_dim, gain = sqrt(2) -> std = sqrt(2 / feat_dim)).
    centers = jax.random.normal(kc, (n_classes, feat_dim), dtype=jnp.float32) * math.sqrt(
        2.0 / feat_dim
    )
    x = jax.random.normal(kx, (batch, feat_dim), dtype=jnp.float32)

    out_centers, neg_dist = dce_loss_mean_forward(x, centers)
    jax.block_until_ready(neg_dist)

    ref_centers, ref_neg_dist = _reference(x, centers)
    assert neg_dist.shape == ref_neg_dist.shape
    assert jnp.allclose(neg_dist, ref_neg_dist, atol=1e-4, rtol=1e-4), "mismatch vs reference"
    assert jnp.array_equal(out_centers, ref_centers)

    print("KERNEL_OK")
</pallas_src>

<mosaic_0001>
module attributes {stable_mosaic.version = 11 : i64} {
  func.func @_neg_dist_kernel(%arg0: i32, %arg1: i32, %arg2: memref<8x32xf32, #tpu.memory_space<vmem>>, %arg3: memref<32x16xf32, #tpu.memory_space<vmem>>, %arg4: memref<1x16xf32, #tpu.memory_space<vmem>>, %arg5: memref<8x16xf32, #tpu.memory_space<vmem>>) attributes {dimension_semantics = [#tpu.dimension_semantics<parallel>, #tpu.dimension_semantics<parallel>], iteration_bounds = array<i64: 1, 1>, scalar_prefetch = 0 : i64, scratch_operands = 0 : i64, tpu.core_type = #tpu.core_type<tc>, window_params = [{transform_indices = @transform_0, window_bounds = array<i64: 8, 32>}, {transform_indices = @transform_1, window_bounds = array<i64: 32, 16>}, {transform_indices = @transform_2, window_bounds = array<i64: 1, 16>}, {transform_indices = @transform_3, window_bounds = array<i64: 8, 16>}]} {
    %c0 = arith.constant 0 : index
    %c0_0 = arith.constant 0 : index
    %0 = vector.load %arg2[%c0, %c0_0] : memref<8x32xf32, #tpu.memory_space<vmem>>, vector<8x32xf32>
    %c0_1 = arith.constant 0 : index
    %c0_2 = arith.constant 0 : index
    %1 = vector.load %arg3[%c0_1, %c0_2] : memref<32x16xf32, #tpu.memory_space<vmem>>, vector<32x16xf32>
    %cst = arith.constant dense<0.000000e+00> : vector<8x16xf32>
    %2 = tpu.matmul %0, %1, %cst {dimension_numbers = #tpu.dot_dimension_numbers<[1], [0], [0], [1], [0, 0, 1, 1], [], []>} : vector<8x32xf32>, vector<32x16xf32>, vector<8x16xf32> -> vector<8x16xf32>
    %3 = arith.mulf %0, %0 : vector<8x32xf32>
    %cst_3 = arith.constant dense<0.000000e+00> : vector<8xf32>
    %4 = vector.multi_reduction <add>, %3, %cst_3 [1] : vector<8x32xf32> to vector<8xf32>
    %5 = vector.shape_cast %4 : vector<8xf32> to vector<8x1xf32>
    %cst_4 = arith.constant 2.000000e+00 : f32
    %6 = vector.broadcast %cst_4 : f32 to vector<8x16xf32>
    %7 = arith.mulf %6, %2 : vector<8x16xf32>
    %8 = vector.broadcast %5 : vector<8x1xf32> to vector<8x16xf32>
    %9 = arith.subf %7, %8 : vector<8x16xf32>
    %c0_5 = arith.constant 0 : index
    %c0_6 = arith.constant 0 : index
    %10 = vector.load %arg4[%c0_5, %c0_6] : memref<1x16xf32, #tpu.memory_space<vmem>>, vector<1x16xf32>
    %11 = vector.broadcast %10 : vector<1x16xf32> to vector<8x16xf32>
    %12 = arith.subf %9, %11 : vector<8x16xf32>
    %c0_7 = arith.constant 0 : index
    %c0_8 = arith.constant 0 : index
    %13 = vector.load %arg5[%c0_7, %c0_8] : memref<8x16xf32, #tpu.memory_space<vmem>>, vector<8x16xf32>
    tpu.vector_store %arg5[%c0_7, %c0_8], %12 {strides = array<i32>} : memref<8x16xf32, #tpu.memory_space<vmem>>, vector<8x16xf32>,
    return
  }
  func.func @transform_0(%arg0: i32, %arg1: i32) -> (i32, i32) {
    %c0_i32 = arith.constant 0 : i32
    %c0_i32_0 = arith.constant 0 : i32
    return %arg0, %c0_i32 : i32, i32
  }
  func.func @transform_1(%arg0: i32, %arg1: i32) -> (i32, i32) {
    %c0_i32 = arith.constant 0 : i32
    %c0_i32_0 = arith.constant 0 : i32
    return %c0_i32, %arg1 : i32, i32
  }
  func.func @transform_2(%arg0: i32, %arg1: i32) -> (i32, i32) {
    %c0_i32 = arith.constant 0 : i32
    %c0_i32_0 = arith.constant 0 : i32
    return %c0_i32, %arg1 : i32, i32
  }
  func.func @transform_3(%arg0: i32, %arg1: i32) -> (i32, i32) {
    %c0_i32 = arith.constant 0 : i32
    return %arg0, %arg1 : i32, i32
  }
}

</mosaic_0001>

<llo_original>
// kernel: tpu_custom_call.1
$region0: #{tpu_custom_call.1}
  #allocation0 [shape = 'u32[]', space=smem, size = 0x4, offset = 0x4, fixed_abs, tag = 'smem constant byte address 0x4 - core index']
  #allocation1 [shape = 'u32[144,128]{1,0:T(1,128)}', space=vmem, size = 0x12000, scoped, tag = 'internal scratch']
  %s0 = inlined_call_operand.vmem [shape: f32[8,32], index: 0, kind: input, shape index: {}]
  %s1 = inlined_call_operand.vmem [shape: f32[32,16], index: 1, kind: input, shape index: {}]
  %s2 = inlined_call_operand.vmem [shape: f32[1,16], index: 2, kind: input, shape index: {}]
  %s3 = inlined_call_operand.hbm [shape: f32[8,16], index: 3, kind: output, shape index: {}]
  %s4 = sld [smem:[#allocation0]]
  $region22: #{tpu_custom_call.1} parent=0
    _
  %s6 = ssub.s32 1, %s4
  %s7 = scalar_select 0, %s6, %s4
  $region1: #{tpu_custom_call.1} parent=0
    #allocation2 [shape = 'u8[4096]{0}', space=vmem, size = 0x1000, scoped, tag = 'output window, operand 0, single buffered']
    #allocation3 [shape = 's32[1]{0}', space=sflag, size = 0x4, scoped, tag = 'scoped memory for tpu_custom_call.1']
    %8 = vsyncpa [#allocation3], 0
    // Predicated region
    $region2: #{tpu_custom_call.1} parent=1 // pred_check
      _
    $region3: #{tpu_custom_call.1} parent=1 // pred_check_branch
      %10 = sbr.rel (0) target = $region5
    $region4: #{tpu_custom_call.1} parent=1 // pred_region
      _
    $region5: #{tpu_custom_call.1} parent=1 // pred_fallthru
      _
    // Predicated region
    $region6: #{tpu_custom_call.1} parent=1 // pred_check
      _
    $region7: #{tpu_custom_call.1} parent=1 // pred_check_branch
      %12 = sbr.rel (0) target = $region9
    $region8: #{tpu_custom_call.1} parent=1 // pred_region
      _
    $region9: #{tpu_custom_call.1} parent=1 // pred_fallthru
      _
    // Predicated region
    $region10: #{tpu_custom_call.1} parent=1 // pred_check
      _
    $region11: #{tpu_custom_call.1} parent=1 // pred_check_branch
      %14 = sbr.rel (0) target = $region13
    $region12: #{tpu_custom_call.1} parent=1 // pred_region
      _
    $region13: #{tpu_custom_call.1} parent=1 // pred_fallthru
      _
    %v15 = vld [vmem:[%s0] sm:$0xff]
    %v16 = vld [vmem:[%s1] sm:$0xff]
    %v17 = vld [vmem:[%s1 + $0x8] sm:$0xff]
    %v18 = vld [vmem:[%s1 + $0x10] sm:$0xff]
    %v19 = vld [vmem:[%s1 + $0x18] sm:$0xff]
    %vm20 = vcmask 261120
    %v22 = vsel %vm20, %v15, 0
    %24 = vmatprep.subr.mxu0 0.0
    %25 = vmatpush1.msra.mxu0 %v16
    %26 = vmatprep.subr.mxu0 0.0
    %27 = vmatpush1.msra.mxu0 %v17
    %28 = vmatprep.subr.mxu0 0.0
    %29 = vmatpush1.msra.mxu0 %v18
    %30 = vmatprep.subr.mxu0 0.0
    %31 = vmatpush1.msra.mxu0 %v19
    %32 = vmatprep.subr.mxu0 0.0
    %33 = vmatpush1.msra.mxu0 0.0
    %34 = vmatprep.subr.mxu0 0.0
    %35 = vmatpush1.msra.mxu0 0.0
    %36 = vmatprep.subr.mxu0 0.0
    %37 = vmatpush1.msra.mxu0 0.0
    %38 = vmatprep.subr.mxu0 0.0
    %39 = vmatpush1.msra.mxu0 0.0
    %40 = vmatprep.subr.mxu0 0.0
    %41 = vmatpush1.msra.mxu0 0.0
    %42 = vmatprep.subr.mxu0 0.0
    %43 = vmatpush1.msra.mxu0 0.0
    %44 = vmatprep.subr.mxu0 0.0
    %45 = vmatpush1.msra.mxu0 0.0
    %46 = vmatprep.subr.mxu0 0.0
    %47 = vmatpush1.msra.mxu0 0.0
    %48 = vmatprep.subr.mxu0 0.0
    %49 = vmatpush1.msra.mxu0 0.0
    %50 = vmatprep.subr.mxu0 0.0
    %51 = vmatpush1.msra.mxu0 0.0
    %52 = vmatprep.subr.mxu0 0.0
    %53 = vmatpush1.msra.mxu0 0.0
    %54 = vmatprep.subr.mxu0 0.0
    %55 = vmatpush1.msra.mxu0 0.0
    %56 = vmatprep.subr.mxu0 0.0
    %57 = vmatpush1.msra.mxu0 0.0
    %58 = vmatprep.subr.mxu0 0.0
    %59 = vmatpush1.msra.mxu0 0.0
    %60 = vmatprep.subr.mxu0 0.0
    %61 = vmatpush1.msra.mxu0 0.0
    %62 = vmatprep.subr.mxu0 0.0
    %63 = vmatpush1.msra.mxu0 0.0
    %64 = vmatprep.subr.mxu0 0.0
    %65 = vmatpush1.msra.mxu0 0.0
    %66 = vmatprep.subr.mxu0 0.0
    %67 = vmatpush1.msra.mxu0 0.0
    %68 = vmatprep.subr.mxu0 0.0
    %69 = vmatpush1.msra.mxu0 0.0
    %70 = vmatprep.subr.mxu0 0.0
    %71 = vmatpush1.msra.mxu0 0.0
    %72 = vmatprep.subr.mxu0 0.0
    %73 = vmatpush1.msra.mxu0 0.0
    %74 = vmatprep.subr.mxu0 0.0
    %75 = vmatpush1.msra.mxu0 0.0
    %76 = vmatprep.subr.mxu0 0.0
    %77 = vmatpush1.msra.mxu0 0.0
    %78 = vmatprep.subr.mxu0 0.0
    %79 = vmatpush1.msra.mxu0 0.0
    %80 = vmatprep.subr.mxu0 0.0
    %81 = vmatpush1.msra.mxu0 0.0
    %82 = vmatprep.subr.mxu0 0.0
    %83 = vmatpush1.msra.mxu0 0.0
    %84 = vmatprep.subr.mxu0 0.0
    %85 = vmatpush1.msra.mxu0 0.0
    %86 = vmatprep.subr.mxu0 0.0
    %87 = vmatpush1.msra.mxu0 0.0
    %88 = vmatprep.mubr.f32.mxu0 0.0
    %89 = vmatmul.mubr.f32.gmra.mrb[0].mxu0 %v22
    %v90 = vpop.f32.mrb[0].mxu0
    %v91 = vadd.f32 0.0, %v90
    %v92 = vpop.f32.mrb[0].mxu0
    %93 = vdwg.mxu0
    %v94 = vmul.f32 %v15, %v15
    %v95 = vsel %vm20, %v94, 0.0
    %96 = vadd.xlane.f32.xlu0 %v95
    %v97 = vpop.xlane.xlu0 %96
    %v98 = vmul.f32 %v91, 2.0
    %v99 = vsub.f32 %v98, %v97
    %v100 = vld [vmem:[%s2] sm:$0x1]
    %v102 = vlaneseq
    %v103 = vshrl.u32 %v102, 7
    %v104 = vsub.s32 0, %v103
    %v105 = vrot.slane %v100, %v104
    %v107 = vsub.f32 %v99, %v105
    %vm108 = vcmask 130048
    %109 = vst.msk [vmem:[#allocation2] sm:$0xff] %vm108, %v107
    // Predicated region
    $region14: #{tpu_custom_call.1} parent=1 // pred_check
      _
    $region15: #{tpu_custom_call.1} parent=1 // pred_check_branch
      %111 = sbr.rel (0) target = $region17
    $region16: #{tpu_custom_call.1} parent=1 // pred_region
      %s113 = ssub.s32 128, 128
      %114 = vsyncadd [#allocation3], %s113
      %s116 = sshll.u32 [#allocation2], 4
      %s117 = int_to_ptr.vmem [resolvable:$true] %s116
      %119 = dma.vmem_to_hbm [thread:$0]  %s117, 128, %s3, [#allocation3]
    $region17: #{tpu_custom_call.1} parent=1 // pred_fallthru
      _
    // Predicated region
    $region18: #{tpu_custom_call.1} parent=1 // pred_check
      _
    $region19: #{tpu_custom_call.1} parent=1 // pred_check_branch
      %121 = sbr.rel (0) target = $region21
    $region20: #{tpu_custom_call.1} parent=1 // pred_region
      %122 = dma.done [#allocation3], 128
    $region21: #{tpu_custom_call.1} parent=1 // pred_fallthru
      _
    %123 = vsyncpa [#allocation3], 1

</llo_original>
